<compile_context>
chip_gen: v7x
topology: tpu7x:2x2x1
jax: 0.10.0
libtpu: 0.0.40
codegen_flags: <defaults>
</compile_context>

<pallas_src>
import functools

import jax
import jax.numpy as jnp
from jax.experimental import pallas as pl
from jax.experimental.pallas import tpu as pltpu

DMAX = 128  # padded feature width (one lane tile)
TB = 128    # batch rows per grid step (feeds >=128 MXU rows per dot)


def _mlp_kernel(x_ref, w_ref, b_ref, o_ref, *, n_layers):
    """One batch tile through the whole hidden-layer chain; params VMEM-resident.

    x_ref: (TB, DMAX)       bf16   activation tile
    w_ref: (L, DMAX, DMAX)  bf16   transposed weights (in_features x out_features)
    b_ref: (L, 1, DMAX)     f32    biases
    o_ref: (TB, DMAX)       f32    output tile
    """
    act_bf16 = x_ref[...]                 # (TB, DMAX) bf16, carried in vregs
    b_all = b_ref[...]                    # load bias stack once (L, 1, DMAX) f32
    act_f32 = act_bf16.astype(jnp.float32)
    for l in range(n_layers):             # static unroll — n_layers is static
        h = jnp.dot(act_bf16, w_ref[l], preferred_element_type=jnp.float32)
        act_f32 = jnp.maximum(h + b_all[l], 0.0)   # f32 bias-add + ReLU epilogue
        act_bf16 = act_f32.astype(jnp.bfloat16)    # bf16 feed for the next MXU dot
        # TODO(synk): nn.Dropout (train-mode Bernoulli mask + 1/(1-p) scaling) is
        # treated as identity (eval-mode semantics); could be added with
        # pltpu.prng_seed + pltpu.stateful_bernoulli if training behaviour is
        # required.
    o_ref[...] = act_f32


@functools.partial(jax.jit, static_argnames=("n_layers",))
def mlp_forward(x_pad, w_stack, b_stack, *, n_layers):
    """x_pad: (B_pad, DMAX) bf16; w_stack: (L, DMAX, DMAX) bf16; b_stack: (L, 1, DMAX) f32."""
    B_pad = x_pad.shape[0]
    L = w_stack.shape[0]
    kernel = functools.partial(_mlp_kernel, n_layers=n_layers)
    return pl.pallas_call(
        kernel,
        out_shape=jax.ShapeDtypeStruct((B_pad, DMAX), jnp.float32),
        grid_spec=pltpu.PrefetchScalarGridSpec(
            num_scalar_prefetch=0,
            grid=(B_pad // TB,),
            in_specs=[
                # Activations: tiled over the batch (double-buffered by Pallas).
                pl.BlockSpec((TB, DMAX), lambda i: (i, 0)),
                # Parameter stacks: constant block index -> stay VMEM-resident
                # across grid steps (no re-DMA).
                pl.BlockSpec((L, DMAX, DMAX), lambda i: (0, 0, 0)),
                pl.BlockSpec((L, 1, DMAX), lambda i: (0, 0, 0)),
            ],
            out_specs=pl.BlockSpec((TB, DMAX), lambda i: (i, 0)),
        ),
        compiler_params=pltpu.CompilerParams(
            # Batch tiles are independent: shardable across v7x's 2 TensorCores.
            dimension_semantics=("parallel",),
            # Explicit budget; comfortably under v7x's 64 MiB physical VMEM.
            vmem_limit_bytes=32 * 1024 * 1024,
        ),
    )(x_pad, w_stack, b_stack)


def _init_linear(key, in_dim, out_dim):
    """Deterministic nn.Linear-style init: U(-1/sqrt(in), 1/sqrt(in))."""
    kw, kb = jax.random.split(key)
    bound = 1.0 / jnp.sqrt(jnp.float32(in_dim))
    w = jax.random.uniform(kw, (out_dim, in_dim), jnp.float32, -bound, bound)
    b = jax.random.uniform(kb, (out_dim,), jnp.float32, -bound, bound)
    return w, b


if __name__ == "__main__":
    # "trial" hyperparameters, fixed deterministically in-script.
    B = 256                      # two TB=128 batch tiles -> exercises the grid
    INPUT_DIM = 32
    OUTPUT_DIM = 8
    HIDDEN = [64, 32, 16]        # trial.suggest_int('n_units_l{i}', 4, 128)
    N_LAYERS = len(HIDDEN)       # trial.suggest_int('n_layers', 1, 8)
    DROPOUT_P = 0.3              # trial.suggest_float('dropout', 0.2, 0.5)  (identity here)

    key = jax.random.PRNGKey(0)
    key, kx = jax.random.split(key)
    x = jax.random.normal(kx, (B, INPUT_DIM), jnp.float32)

    # Hidden layers (the only layers the forward actually applies).
    dims = [INPUT_DIM] + HIDDEN
    weights, biases = [], []
    for i in range(N_LAYERS):
        key, kl = jax.random.split(key)
        w, b = _init_linear(kl, dims[i], dims[i + 1])   # PyTorch (out, in) layout
        weights.append(w)
        biases.append(b)

    # Final fc (constructed in __init__ but never applied by forward's zip);
    # kept only for structural parity.
    key, kf = jax.random.split(key)
    _final_w, _final_b = _init_linear(kf, HIDDEN[-1], OUTPUT_DIM)

    # Pad parameters to (L, DMAX, DMAX) bf16 / (L, 1, DMAX) f32 stacks,
    # transposed so the kernel does  act @ Wt.
    w_stack = jnp.zeros((N_LAYERS, DMAX, DMAX), jnp.bfloat16)
    b_stack = jnp.zeros((N_LAYERS, 1, DMAX), jnp.float32)
    for i, (w, b) in enumerate(zip(weights, biases)):
        w_stack = w_stack.at[i, : w.shape[1], : w.shape[0]].set(
            w.T.astype(jnp.bfloat16))
        b_stack = b_stack.at[i, 0, : b.shape[0]].set(b)

    # Pad batch to a multiple of TB and features to DMAX; activations in bf16
    # (halves activation HBM traffic; exact since padded lanes are zero).
    B_pad = pl.cdiv(B, TB) * TB
    x_pad = jnp.zeros((B_pad, DMAX), jnp.bfloat16)
    x_pad = x_pad.at[:B, :INPUT_DIM].set(x.astype(jnp.bfloat16))

    out_pad = mlp_forward(x_pad, w_stack, b_stack, n_layers=N_LAYERS)
    out = out_pad[:B, : HIDDEN[-1]]
    jax.block_until_ready(out)

    # The PyTorch forward *returns* a freshly constructed nn.Linear module;
    # its JAX analogue is a deterministically initialized parameter pair
    # (plain-JAX glue, nothing to compute in-kernel).
    key, kr = jax.random.split(key)
    returned_linear_w, returned_linear_b = _init_linear(kr, INPUT_DIM, OUTPUT_DIM)
    jax.block_until_ready((returned_linear_w, returned_linear_b))

    # Reference 1: same bf16 feed / f32 accumulate path as the kernel
    # (isolates kernel-vs-XLA differences; should match tightly).
    ref = x
    for i in range(N_LAYERS):
        ref = jnp.maximum(
            jnp.dot(ref.astype(jnp.bfloat16),
                    weights[i].T.astype(jnp.bfloat16),
                    preferred_element_type=jnp.float32) + biases[i],
            0.0)

    # Reference 2: full f32 path (sanity check that bf16 quantization of the
    # weights/activations stays within a loose tolerance).
    ref_f32 = x
    for w, b in zip(weights, biases):
        ref_f32 = jnp.maximum(ref_f32 @ w.T + b, 0.0)

    assert out.shape == (B, HIDDEN[-1])
    assert jnp.allclose(out, ref, rtol=1e-3, atol=1e-3), "mismatch vs bf16-matched reference"
    assert jnp.allclose(out, ref_f32, rtol=5e-2, atol=5e-2), "mismatch vs f32 reference"
    print("KERNEL_OK")
</pallas_src>

<mosaic_0001>
module attributes {stable_mosaic.version = 11 : i64} {
  func.func @_mlp_kernel(%arg0: i32, %arg1: memref<128x128xbf16, #tpu.memory_space<vmem>>, %arg2: memref<3x128x128xbf16, #tpu.memory_space<vmem>>, %arg3: memref<3x1x128xf32, #tpu.memory_space<vmem>>, %arg4: memref<128x128xf32, #tpu.memory_space<vmem>>) attributes {dimension_semantics = [#tpu.dimension_semantics<parallel>], iteration_bounds = array<i64: 2>, scalar_prefetch = 0 : i64, scratch_operands = 0 : i64, tpu.core_type = #tpu.core_type<tc>, window_params = [{transform_indices = @transform_0, window_bounds = array<i64: 128, 128>}, {pipeline_mode = #tpu.pipeline_mode<synchronous>, transform_indices = @transform_1, window_bounds = array<i64: 3, 128, 128>}, {pipeline_mode = #tpu.pipeline_mode<synchronous>, transform_indices = @transform_2, window_bounds = array<i64: 3, 1, 128>}, {transform_indices = @transform_3, window_bounds = array<i64: 128, 128>}]} {
    %c0 = arith.constant 0 : index
    %c0_0 = arith.constant 0 : index
    %0 = vector.load %arg1[%c0, %c0_0] : memref<128x128xbf16, #tpu.memory_space<vmem>>, vector<128x128xbf16>
    %c0_1 = arith.constant 0 : index
    %c0_2 = arith.constant 0 : index
    %c0_3 = arith.constant 0 : index
    %1 = vector.load %arg3[%c0_1, %c0_2, %c0_3] : memref<3x1x128xf32, #tpu.memory_space<vmem>>, vector<3x1x128xf32>
    %c0_4 = arith.constant 0 : index
    %c0_5 = arith.constant 0 : index
    %c0_6 = arith.constant 0 : index
    %2 = vector.load %arg2[%c0_4, %c0_5, %c0_6] : memref<3x128x128xbf16, #tpu.memory_space<vmem>>, vector<1x128x128xbf16>
    %3 = vector.shape_cast %2 : vector<1x128x128xbf16> to vector<128x128xbf16>
    %cst = arith.constant dense<0.000000e+00> : vector<128x128xf32>
    %4 = tpu.matmul %0, %3, %cst {dimension_numbers = #tpu.dot_dimension_numbers<[1], [0], [0], [1], [0, 0, 1, 1], [], []>} : vector<128x128xbf16>, vector<128x128xbf16>, vector<128x128xf32> -> vector<128x128xf32>
    %5 = vector.extract_strided_slice %1 {offsets = [0, 0, 0], sizes = [1, 1, 128], strides = [1, 1, 1]} : vector<3x1x128xf32> to vector<1x1x128xf32>
    %6 = vector.shape_cast %5 : vector<1x1x128xf32> to vector<1x128xf32>
    %7 = vector.broadcast %6 : vector<1x128xf32> to vector<128x128xf32>
    %8 = arith.addf %4, %7 : vector<128x128xf32>
    %cst_7 = arith.constant 0.000000e+00 : f32
    %9 = vector.broadcast %cst_7 : f32 to vector<128x128xf32>
    %10 = arith.maximumf %8, %9 : vector<128x128xf32>
    %11 = arith.truncf %10 : vector<128x128xf32> to vector<128x128xbf16>
    %c1 = arith.constant 1 : index
    %c0_8 = arith.constant 0 : index
    %c0_9 = arith.constant 0 : index
    %12 = vector.load %arg2[%c1, %c0_8, %c0_9] : memref<3x128x128xbf16, #tpu.memory_space<vmem>>, vector<1x128x128xbf16>
    %13 = vector.shape_cast %12 : vector<1x128x128xbf16> to vector<128x128xbf16>
    %cst_10 = arith.constant dense<0.000000e+00> : vector<128x128xf32>
    %14 = tpu.matmul %11, %13, %cst_10 {dimension_numbers = #tpu.dot_dimension_numbers<[1], [0], [0], [1], [0, 0, 1, 1], [], []>} : vector<128x128xbf16>, vector<128x128xbf16>, vector<128x128xf32> -> vector<128x128xf32>
    %15 = vector.extract_strided_slice %1 {offsets = [1, 0, 0], sizes = [1, 1, 128], strides = [1, 1, 1]} : vector<3x1x128xf32> to vector<1x1x128xf32>
    %16 = vector.shape_cast %15 : vector<1x1x128xf32> to vector<1x128xf32>
    %17 = vector.broadcast %16 : vector<1x128xf32> to vector<128x128xf32>
    %18 = arith.addf %14, %17 : vector<128x128xf32>
    %cst_11 = arith.constant 0.000000e+00 : f32
    %19 = vector.broadcast %cst_11 : f32 to vector<128x128xf32>
    %20 = arith.maximumf %18, %19 : vector<128x128xf32>
    %21 = arith.truncf %20 : vector<128x128xf32> to vector<128x128xbf16>
    %c2 = arith.constant 2 : index
    %c0_12 = arith.constant 0 : index
    %c0_13 = arith.constant 0 : index
    %22 = vector.load %arg2[%c2, %c0_12, %c0_13] : memref<3x128x128xbf16, #tpu.memory_space<vmem>>, vector<1x128x128xbf16>
    %23 = vector.shape_cast %22 : vector<1x128x128xbf16> to vector<128x128xbf16>
    %cst_14 = arith.constant dense<0.000000e+00> : vector<128x128xf32>
    %24 = tpu.matmul %21, %23, %cst_14 {dimension_numbers = #tpu.dot_dimension_numbers<[1], [0], [0], [1], [0, 0, 1, 1], [], []>} : vector<128x128xbf16>, vector<128x128xbf16>, vector<128x128xf32> -> vector<128x128xf32>
    %25 = vector.extract_strided_slice %1 {offsets = [2, 0, 0], sizes = [1, 1, 128], strides = [1, 1, 1]} : vector<3x1x128xf32> to vector<1x1x128xf32>
    %26 = vector.shape_cast %25 : vector<1x1x128xf32> to vector<1x128xf32>
    %27 = vector.broadcast %26 : vector<1x128xf32> to vector<128x128xf32>
    %28 = arith.addf %24, %27 : vector<128x128xf32>
    %cst_15 = arith.constant 0.000000e+00 : f32
    %29 = vector.broadcast %cst_15 : f32 to vector<128x128xf32>
    %30 = arith.maximumf %28, %29 : vector<128x128xf32>
    %c0_16 = arith.constant 0 : index
    %c0_17 = arith.constant 0 : index
    %31 = vector.load %arg4[%c0_16, %c0_17] : memref<128x128xf32, #tpu.memory_space<vmem>>, vector<128x128xf32>
    tpu.vector_store %arg4[%c0_16, %c0_17], %30 {strides = array<i32>} : memref<128x128xf32, #tpu.memory_space<vmem>>, vector<128x128xf32>,
    return
  }
  func.func @transform_0(%arg0: i32) -> (i32, i32) {
    %c0_i32 = arith.constant 0 : i32
    %c0_i32_0 = arith.constant 0 : i32
    return %arg0, %c0_i32 : i32, i32
  }
  func.func @transform_1(%arg0: i32) -> (i32, i32, i32) {
    %c0_i32 = arith.constant 0 : i32
    %c0_i32_0 = arith.constant 0 : i32
    %c0_i32_1 = arith.constant 0 : i32
    %c0_i32_2 = arith.constant 0 : i32
    return %c0_i32, %c0_i32_0, %c0_i32_1 : i32, i32, i32
  }
  func.func @transform_2(%arg0: i32) -> (i32, i32, i32) {
    %c0_i32 = arith.constant 0 : i32
    %c0_i32_0 = arith.constant 0 : i32
    %c0_i32_1 = arith.constant 0 : i32
    %c0_i32_2 = arith.constant 0 : i32
    return %c0_i32, %c0_i32_0, %c0_i32_1 : i32, i32, i32
  }
  func.func @transform_3(%arg0: i32) -> (i32, i32) {
    %c0_i32 = arith.constant 0 : i32
    %c0_i32_0 = arith.constant 0 : i32
    return %arg0, %c0_i32 : i32, i32
  }
}

</mosaic_0001>

<llo_original>
// kernel: mlp_forward.1
$region0: #{mlp_forward.1}
  #allocation0 [shape = 'u32[]', space=smem, size = 0x4, offset = 0x4, fixed_abs, tag = 'smem constant byte address 0x4 - core index']
  #allocation1 [shape = 'u32[144,128]{1,0:T(1,128)}', space=vmem, size = 0x12000, scoped, tag = 'internal scratch']
  %s0 = inlined_call_operand.hbm [shape: bf16[256,128], index: 0, kind: input, shape index: {}]
  %s1 = inlined_call_operand.hbm [shape: bf16[3,128,128], index: 1, kind: input, shape index: {}]
  %s2 = inlined_call_operand.vmem [shape: f32[3,1,128], index: 2, kind: input, shape index: {}]
  %s3 = inlined_call_operand.hbm [shape: f32[256,128], index: 3, kind: output, shape index: {}]
  %s4 = sld [smem:[#allocation0]]
  $region53: #{mlp_forward.1} parent=0
    _
  %s6 = ssub.s32 1, %s4
  %s7 = scalar_select 0, %s6, %s4
  $region1: #{mlp_forward.1} parent=0
    #allocation2 [shape = 'u8[65536]{0}', space=vmem, size = 0x10000, scoped, tag = 'input window, operand 0']
    #allocation3 [shape = 's32[2]{0}', space=sflag, size = 0x8, scoped, tag = 'scoped memory for mlp_forward.1']
    #allocation4 [shape = 's32[2]{0}', space=sflag, size = 0x8, scoped, tag = 'scoped memory for mlp_forward.1']
    #allocation5 [shape = 'u8[98304]{0}', space=vmem, size = 0x18000, scoped, tag = 'input window, operand 1, single buffered']
    #allocation6 [shape = 's32[1]{0}', space=sflag, size = 0x4, scoped, tag = 'scoped memory for mlp_forward.1']
    #allocation7 [shape = 'u8[131072]{0}', space=vmem, size = 0x20000, scoped, tag = 'output window, operand 0']
    %8 = vsyncpa [#allocation3], 0
    %s9 = scalar_lea.sflag [#allocation3], 1
    %10 = vsyncpa %s9, 0
    %11 = vsyncpa [#allocation6], 0
    %12 = vsyncpa [#allocation4], 0
    %s13 = scalar_lea.sflag [#allocation4], 1
    %14 = vsyncpa %s13, 0
    loop: start=0, step=1, limit=4
    $region2: #{mlp_forward.1} parent=1 // loop_pre_header
      _
    $region3: #{mlp_forward.1} parent=1 // loop_header
      %s16 = sphi 0, %s20
      %p17 = scmp.ge.s32.totalorder %s16, 4
      %s26 = sphi 0, %s28
      %s29 = sphi 0, %s26
      %s30 = sphi 0, %s29
      %s46 = sphi 0, %s30
      %s50 = sphi 0, %s50
      %s52 = sphi 0, %s50
      %s53 = sphi 0, %s52
      %s67 = sphi 0, %s53
      %s71 = sphi 0, %s71
      %s73 = sphi 0, %s71
      %s74 = sphi 0, %s73
      %s88 = sphi 0, %s74
      %s94 = sphi 0, %s96
      %s97 = sphi 0, %s94
      %s98 = sphi 0, %s97
      %s114 = sphi 0, %s98
    $region4: #{mlp_forward.1} parent=1 // loop_header_branch
      %19 = sbr.rel (%p17) target = $region8
    $region5: #{mlp_forward.1} parent=1 // loop_body
      %s21 = ssub.s32 %s16, 1
      %s22 = ssub.s32 %s16, 2
      %s23 = sadd.s32 %s16, 1
      %s24 = ssub.s32 %s16, %s23
      %p25 = scmp.eq.s32.totalorder %s24, 0
      %s27 = sadd.s32 %s26, 1
      %s28 = scalar_select %p25, %s26, %s27
      %p31 = pneg %p25
      %p32 = scmp.eq.s32.totalorder %s16, 1
      %p33 = por %p31, %p32
      %p34 = scmp.ne.s32.totalorder %s26, %s29
      %p35 = scmp.eq.s32.totalorder %s16, 0
      %p36 = por %p34, %p35
      %p37 = scmp.ne.s32.totalorder %s26, %s29
      %p38 = scmp.eq.s32.totalorder %s21, 1
      %p39 = por %p37, %p38
      %p40 = scmp.ne.s32.totalorder %s29, %s30
      %p41 = scmp.eq.s32.totalorder %s21, 0
      %p42 = por %p40, %p41
      %p43 = scmp.ne.s32.totalorder %s29, %s30
      %p44 = scmp.eq.s32.totalorder %s22, 1
      %p45 = por %p43, %p44
      %p47 = scmp.ne.s32.totalorder %s30, %s46
      %p48 = scmp.eq.s32.totalorder %s22, 0
      %p49 = por %p47, %p48
      %s51 = sadd.s32 %s50, 1
      %p54 = scmp.eq.s32.totalorder %s16, 1
      %p55 = scmp.ne.s32.totalorder %s50, %s52
      %p56 = scmp.eq.s32.totalorder %s16, 0
      %p57 = por %p55, %p56
      %p58 = scmp.ne.s32.totalorder %s50, %s52
      %p59 = scmp.eq.s32.totalorder %s21, 1
      %p60 = por %p58, %p59
      %p61 = scmp.ne.s32.totalorder %s52, %s53
      %p62 = scmp.eq.s32.totalorder %s21, 0
      %p63 = por %p61, %p62
      %p64 = scmp.ne.s32.totalorder %s52, %s53
      %p65 = scmp.eq.s32.totalorder %s22, 1
      %p66 = por %p64, %p65
      %p68 = scmp.ne.s32.totalorder %s53, %s67
      %p69 = scmp.eq.s32.totalorder %s22, 0
      %p70 = por %p68, %p69
      %s72 = sadd.s32 %s71, 1
      %p75 = scmp.eq.s32.totalorder %s16, 1
      %p76 = scmp.ne.s32.totalorder %s71, %s73
      %p77 = scmp.eq.s32.totalorder %s16, 0
      %p78 = por %p76, %p77
      %p79 = scmp.ne.s32.totalorder %s71, %s73
      %p80 = scmp.eq.s32.totalorder %s21, 1
      %p81 = por %p79, %p80
      %p82 = scmp.ne.s32.totalorder %s73, %s74
      %p83 = scmp.eq.s32.totalorder %s21, 0
      %p84 = por %p82, %p83
      %p85 = scmp.ne.s32.totalorder %s73, %s74
      %p86 = scmp.eq.s32.totalorder %s22, 1
      %p87 = por %p85, %p86
      %p89 = scmp.ne.s32.totalorder %s74, %s88
      %p90 = scmp.eq.s32.totalorder %s22, 0
      %p91 = por %p89, %p90
      %s92 = ssub.s32 %s16, %s23
      %p93 = scmp.eq.s32.totalorder %s92, 0
      %s95 = sadd.s32 %s94, 1
      %s96 = scalar_select %p93, %s94, %s95
      %p99 = pneg %p93
      %p100 = scmp.eq.s32.totalorder %s16, 1
      %p101 = por %p99, %p100
      %p102 = scmp.ne.s32.totalorder %s94, %s97
      %p103 = scmp.eq.s32.totalorder %s16, 0
      %p104 = por %p102, %p103
      %p105 = scmp.ne.s32.totalorder %s94, %s97
      %p106 = scmp.eq.s32.totalorder %s21, 1
      %p107 = por %p105, %p106
      %p108 = scmp.ne.s32.totalorder %s97, %s98
      %p109 = scmp.eq.s32.totalorder %s21, 0
      %p110 = por %p108, %p109
      %p111 = scmp.ne.s32.totalorder %s97, %s98
      %p112 = scmp.eq.s32.totalorder %s22, 1
      %p113 = por %p111, %p112
      %p115 = scmp.ne.s32.totalorder %s98, %s114
      %p116 = scmp.eq.s32.totalorder %s22, 0
      %p117 = por %p115, %p116
      %p118 = scmp.le.s32.totalorder 1, %s16
      %p119 = scmp.lt.s32.totalorder %s16, 3
      %p120 = pnand %p118, %p119
      %p121 = pneg %p120
      // Predicated region
      $region9: #{mlp_forward.1} parent=5 // pred_check
        _
      $region10: #{mlp_forward.1} parent=5 // pred_check_branch
        %123 = sbr.rel (%p120) target = $region12
      $region11: #{mlp_forward.1} parent=5 // pred_region
        %s124 = ssub.s32 %s16, 1
        // Predicated region
        $region13: #{mlp_forward.1} parent=11 // pred_check
          %p125 = pneg %p63
        $region14: #{mlp_forward.1} parent=11 // pred_check_branch
          %127 = sbr.rel (%p125) target = $region16
        $region15: #{mlp_forward.1} parent=11 // pred_region
          %s129 = ssub.s32 3072, 3072
          %130 = vsyncadd [#allocation6], %s129
          %s131 = sshll.u32 [#allocation5], 4
          %s132 = int_to_ptr.vmem [resolvable:$true] %s131
          %137 = dma.hbm_to_vmem [thread:$0]  %s1, 3072, %s132, [#allocation6], 64, 64, 4
        $region16: #{mlp_forward.1} parent=11 // pred_fallthru
          _
        // Predicated region
        $region17: #{mlp_forward.1} parent=11 // pred_check
          %p138 = pneg %p84
        $region18: #{mlp_forward.1} parent=11 // pred_check_branch
          %140 = sbr.rel (%p138) target = $region20
        $region19: #{mlp_forward.1} parent=11 // pred_region
          _
        $region20: #{mlp_forward.1} parent=11 // pred_fallthru
          _
      $region12: #{mlp_forward.1} parent=5 // pred_fallthru
        _
      %p141 = scmp.lt.s32.totalorder %s16, 2
      // Predicated region
      $region21: #{mlp_forward.1} parent=5 // pred_check
        %p142 = pneg %p141
      $region22: #{mlp_forward.1} parent=5 // pred_check_branch
        %144 = sbr.rel (%p142) target = $region24
      $region23: #{mlp_forward.1} parent=5 // pred_region
        // Predicated region
        $region25: #{mlp_forward.1} parent=23 // pred_check
          %p145 = pneg %p36
        $region26: #{mlp_forward.1} parent=23 // pred_check_branch
          %147 = sbr.rel (%p145) target = $region28
        $region27: #{mlp_forward.1} parent=23 // pred_region
          %s148 = sand.u32 %s26, 1
          %s149 = scalar_lea.sflag [#allocation3], %s148
          %s150 = sand.u32 %s26, 1
          %s151 = smul.addr %s150, 64
          %s152 = scalar_lea.vmem [#allocation2], %s151
          %s153 = smul.u32 16, %s16
          %s155 = ssub.s32 1024, 1024
          %156 = vsyncadd %s149, %s155
          %s157 = smul.addr %s153, 64
          %s158 = scalar_lea.hbm %s0, %s157
          %s159 = sshll.u32 %s152, 4
          %s160 = int_to_ptr.vmem [resolvable:$true] %s159
          %165 = dma.hbm_to_vmem [thread:$0]  %s158, 1024, %s160, %s149, 64, 64, 4
        $region28: #{mlp_forward.1} parent=23 // pred_fallthru
          _
      $region24: #{mlp_forward.1} parent=5 // pred_fallthru
        _
      %p166 = scmp.le.s32.totalorder 1, %s16
      %p167 = scmp.lt.s32.totalorder %s16, 3
      %p168 = pnand %p166, %p167
      %p169 = pneg %p168
      // Predicated region
      $region29: #{mlp_forward.1} parent=5 // pred_check
        _
      $region30: #{mlp_forward.1} parent=5 // pred_check_branch
        %171 = sbr.rel (%p168) target = $region32
      $region31: #{mlp_forward.1} parent=5 // pred_region
        %s172 = ssub.s32 %s16, 1
        %s173 = sand.u32 %s29, 1
        %s174 = scalar_lea.sflag [#allocation3], %s173
        %s175 = sand.u32 %s29, 1
        %s176 = smul.addr %s175, 64
        %s177 = scalar_lea.vmem [#allocation2], %s176
        // Predicated region
        $region33: #{mlp_forward.1} parent=31 // pred_check
          %p178 = pneg %p42
        $region34: #{mlp_forward.1} parent=31 // pred_check_branch
          %180 = sbr.rel (%p178) target = $region36
        $region35: #{mlp_forward.1} parent=31 // pred_region
          %181 = dma.done %s174, 1024
        $region36: #{mlp_forward.1} parent=31 // pred_fallthru
          _
        // Predicated region
        $region37: #{mlp_forward.1} parent=31 // pred_check
          %p182 = pneg %p63
        $region38: #{mlp_forward.1} parent=31 // pred_check_branch
          %184 = sbr.rel (%p182) target = $region40
        $region39: #{mlp_forward.1} parent=31 // pred_region
          %185 = dma.done [#allocation6], 3072
        $region40: #{mlp_forward.1} parent=31 // pred_fallthru
          _
        %s186 = sand.u32 %s29, 1
        %s187 = scalar_lea.sflag [#allocation3], %s186
        %s188 = sand.u32 %s29, 1
        %s189 = smul.addr %s188, 64
        %s190 = scalar_lea.vmem [#allocation2], %s189
        %p191 = pneg %p42
        %p192 = pneg %p39
        %p193 = pneg %p63
        %p194 = pneg %p60
        %p195 = pneg %p84
        %p196 = pneg %p81
        %p197 = pneg %p110
        %p198 = pneg %p107
        %s199 = sand.u32 %s97, 1
        %s200 = scalar_lea.sflag [#allocation4], %s199
        %s201 = sand.u32 %s97, 1
        %s202 = smul.addr %s201, 128
        %s203 = scalar_lea.vmem [#allocation7], %s202
        %s204 = smul.u32 16, %s21
        %s205 = smul.u32 16, %s21
        %v207 = vld [vmem:[%s177] sm:$0xf]
        %v208 = vld [vmem:[%s177 + $0x4] sm:$0xf]
        %v209 = vld [vmem:[%s177 + $0x8] sm:$0xf]
        %v210 = vld [vmem:[%s177 + $0xc] sm:$0xf]
        %v211 = vld [vmem:[%s177 + $0x10] sm:$0xf]
        %v212 = vld [vmem:[%s177 + $0x14] sm:$0xf]
        %v213 = vld [vmem:[%s177 + $0x18] sm:$0xf]
        %v214 = vld [vmem:[%s177 + $0x1c] sm:$0xf]
        %v215 = vld [vmem:[%s177 + $0x20] sm:$0xf]
        %v216 = vld [vmem:[%s177 + $0x24] sm:$0xf]
        %v217 = vld [vmem:[%s177 + $0x28] sm:$0xf]
        %v218 = vld [vmem:[%s177 + $0x2c] sm:$0xf]
        %v219 = vld [vmem:[%s177 + $0x30] sm:$0xf]
        %v220 = vld [vmem:[%s177 + $0x34] sm:$0xf]
        %v221 = vld [vmem:[%s177 + $0x38] sm:$0xf]
        %v222 = vld [vmem:[%s177 + $0x3c] sm:$0xf]
        %v223 = vld [vmem:[%s2] sm:$0x1]
        %v224 = vld [vmem:[%s2 + $0x1] sm:$0x1]
        %v225 = vld [vmem:[%s2 + $0x2] sm:$0x1]
        %v226 = vld [vmem:[#allocation5] sm:$0xf]
        %v227 = vld [vmem:[#allocation5 + $0x4] sm:$0xf]
        %v228 = vld [vmem:[#allocation5 + $0x8] sm:$0xf]
        %v229 = vld [vmem:[#allocation5 + $0xc] sm:$0xf]
        %v230 = vld [vmem:[#allocation5 + $0x10] sm:$0xf]
        %v231 = vld [vmem:[#allocation5 + $0x14] sm:$0xf]
        %v232 = vld [vmem:[#allocation5 + $0x18] sm:$0xf]
        %v233 = vld [vmem:[#allocation5 + $0x1c] sm:$0xf]
        %v234 = vld [vmem:[#allocation5 + $0x20] sm:$0xf]
        %v235 = vld [vmem:[#allocation5 + $0x24] sm:$0xf]
        %v236 = vld [vmem:[#allocation5 + $0x28] sm:$0xf]
        %v237 = vld [vmem:[#allocation5 + $0x2c] sm:$0xf]
        %v238 = vld [vmem:[#allocation5 + $0x30] sm:$0xf]
        %v239 = vld [vmem:[#allocation5 + $0x34] sm:$0xf]
        %v240 = vld [vmem:[#allocation5 + $0x38] sm:$0xf]
        %v241 = vld [vmem:[#allocation5 + $0x3c] sm:$0xf]
        %v243 = vlaneseq
        %v244 = vshrl.u32 %v243, 7
        %v245 = vsub.s32 0, %v244
        %v246 = vrot.slane %v223, %v245
        %v264 = vunpack.c.l.b16 %v207
        %v265 = vunpack.c.l.b16 %v208
        %v266 = vunpack.c.l.b16 %v209
        %v267 = vunpack.c.l.b16 %v210
        %v268 = vunpack.c.l.b16 %v211
        %v269 = vunpack.c.l.b16 %v212
        %v270 = vunpack.c.l.b16 %v213
        %v271 = vunpack.c.l.b16 %v214
        %v272 = vunpack.c.l.b16 %v215
        %v273 = vunpack.c.l.b16 %v216
        %v274 = vunpack.c.l.b16 %v217
        %v275 = vunpack.c.l.b16 %v218
        %v276 = vunpack.c.l.b16 %v219
        %v277 = vunpack.c.l.b16 %v220
        %v278 = vunpack.c.l.b16 %v221
        %v279 = vunpack.c.l.b16 %v222
        %v280 = vpack.c.b16 %v265, %v264
        %v281 = vpack.c.b16 %v267, %v266
        %v282 = vpack.c.b16 %v269, %v268
        %v283 = vpack.c.b16 %v271, %v270
        %v284 = vpack.c.b16 %v273, %v272
        %v285 = vpack.c.b16 %v275, %v274
        %v286 = vpack.c.b16 %v277, %v276
        %v287 = vpack.c.b16 %v279, %v278
        %v312 = vunpack.c.l.b16 %v226
        %v313 = vunpack.c.l.b16 %v227
        %v314 = vunpack.c.l.b16 %v228
        %v315 = vunpack.c.l.b16 %v229
        %v316 = vunpack.c.l.b16 %v230
        %v317 = vunpack.c.l.b16 %v231
        %v318 = vunpack.c.l.b16 %v232
        %v319 = vunpack.c.l.b16 %v233
        %v320 = vunpack.c.l.b16 %v234
        %v321 = vunpack.c.l.b16 %v235
        %v322 = vunpack.c.l.b16 %v236
        %v323 = vunpack.c.l.b16 %v237
        %v324 = vunpack.c.l.b16 %v238
        %v325 = vunpack.c.l.b16 %v239
        %v326 = vunpack.c.l.b16 %v240
        %v327 = vunpack.c.l.b16 %v241
        %v328 = vpack.c.b16 %v313, %v312
        %v329 = vpack.c.b16 %v315, %v314
        %v330 = vpack.c.b16 %v317, %v316
        %v331 = vpack.c.b16 %v319, %v318
        %v332 = vpack.c.b16 %v321, %v320
        %v333 = vpack.c.b16 %v323, %v322
        %v334 = vpack.c.b16 %v325, %v324
        %v335 = vpack.c.b16 %v327, %v326
        %344 = vmatprep.subr.bf16.mxu0 0
        %345 = vmatpush1.bf16.msra.mxu0 %v328
        %346 = vmatprep.subr.bf16.mxu0 0
        %347 = vmatpush1.bf16.msra.mxu0 %v329
        %348 = vmatprep.subr.bf16.mxu0 0
        %349 = vmatpush1.bf16.msra.mxu0 %v330
        %350 = vmatprep.subr.bf16.mxu0 0
        %351 = vmatpush1.bf16.msra.mxu0 %v331
        %352 = vmatprep.subr.bf16.mxu0 0
        %353 = vmatpush1.bf16.msra.mxu0 %v332
        %354 = vmatprep.subr.bf16.mxu0 0
        %355 = vmatpush1.bf16.msra.mxu0 %v333
        %356 = vmatprep.subr.bf16.mxu0 0
        %357 = vmatpush1.bf16.msra.mxu0 %v334
        %358 = vmatprep.subr.bf16.mxu0 0
        %359 = vmatpush1.bf16.msra.mxu0 %v335
        %360 = vmatprep.subr.bf16.mxu0 0
        %361 = vmatpush1.bf16.msra.mxu0 0
        %362 = vmatprep.subr.bf16.mxu0 0
        %363 = vmatpush1.bf16.msra.mxu0 0
        %364 = vmatprep.subr.bf16.mxu0 0
        %365 = vmatpush1.bf16.msra.mxu0 0
        %366 = vmatprep.subr.bf16.mxu0 0
        %367 = vmatpush1.bf16.msra.mxu0 0
        %368 = vmatprep.subr.bf16.mxu0 0
        %369 = vmatpush1.bf16.msra.mxu0 0
        %370 = vmatprep.subr.bf16.mxu0 0
        %371 = vmatpush1.bf16.msra.mxu0 0
        %372 = vmatprep.subr.bf16.mxu0 0
        %373 = vmatpush1.bf16.msra.mxu0 0
        %374 = vmatprep.subr.bf16.mxu0 0
        %375 = vmatpush1.bf16.msra.mxu0 0
        %376 = vmatprep.mubr.bf16.mxu0 0
        %377 = vmatmul.mubr.bf16.gmra.mrb[0].mxu0 %v280
        %v378 = vpop.f32.mrb[0].mxu0
        %v379 = vadd.f32 %v246, %v378
        %v380 = vpop.f32.mrb[0].mxu0
        %v381 = vpop.f32.mrb[0].mxu0
        %v382 = vadd.f32 %v246, %v381
        %v383 = vpop.f32.mrb[0].mxu0
        %384 = vmatprep.mubr.bf16.mxu0 0
        %385 = vmatmul.mubr.bf16.gmra.mrb[0].mxu0 %v281
        %v386 = vpop.f32.mrb[0].mxu0
        %v387 = vadd.f32 %v246, %v386
        %v388 = vpop.f32.mrb[0].mxu0
        %v389 = vpop.f32.mrb[0].mxu0
        %v390 = vadd.f32 %v246, %v389
        %v391 = vpop.f32.mrb[0].mxu0
        %392 = vmatprep.mubr.bf16.mxu0 0
        %393 = vmatmul.mubr.bf16.gmra.mrb[0].mxu0 %v282
        %v394 = vpop.f32.mrb[0].mxu0
        %v395 = vadd.f32 %v246, %v394
        %v396 = vpop.f32.mrb[0].mxu0
        %v397 = vpop.f32.mrb[0].mxu0
        %v398 = vadd.f32 %v246, %v397
        %v399 = vpop.f32.mrb[0].mxu0
        %400 = vmatprep.mubr.bf16.mxu0 0
        %401 = vmatmul.mubr.bf16.gmra.mrb[0].mxu0 %v283
        %v402 = vpop.f32.mrb[0].mxu0
        %v403 = vadd.f32 %v246, %v402
        %v404 = vpop.f32.mrb[0].mxu0
        %v405 = vpop.f32.mrb[0].mxu0
        %v406 = vadd.f32 %v246, %v405
        %v407 = vpop.f32.mrb[0].mxu0
        %408 = vmatprep.mubr.bf16.mxu0 0
        %409 = vmatmul.mubr.bf16.gmra.mrb[0].mxu0 %v284
        %v410 = vpop.f32.mrb[0].mxu0
        %v411 = vadd.f32 %v246, %v410
        %v412 = vpop.f32.mrb[0].mxu0
        %v413 = vpop.f32.mrb[0].mxu0
        %v414 = vadd.f32 %v246, %v413
        %v415 = vpop.f32.mrb[0].mxu0
        %416 = vmatprep.mubr.bf16.mxu0 0
        %417 = vmatmul.mubr.bf16.gmra.mrb[0].mxu0 %v285
        %v418 = vpop.f32.mrb[0].mxu0
        %v419 = vadd.f32 %v246, %v418
        %v420 = vpop.f32.mrb[0].mxu0
        %v421 = vpop.f32.mrb[0].mxu0
        %v422 = vadd.f32 %v246, %v421
        %v423 = vpop.f32.mrb[0].mxu0
        %424 = vmatprep.mubr.bf16.mxu0 0
        %425 = vmatmul.mubr.bf16.gmra.mrb[0].mxu0 %v286
        %v426 = vpop.f32.mrb[0].mxu0
        %v427 = vadd.f32 %v246, %v426
        %v428 = vpop.f32.mrb[0].mxu0
        %v429 = vpop.f32.mrb[0].mxu0
        %v430 = vadd.f32 %v246, %v429
        %v431 = vpop.f32.mrb[0].mxu0
        %432 = vmatprep.mubr.bf16.mxu0 0
        %433 = vmatmul.mubr.bf16.gmra.mrb[0].mxu0 %v287
        %v434 = vpop.f32.mrb[0].mxu0
        %v435 = vadd.f32 %v246, %v434
        %v436 = vpop.f32.mrb[0].mxu0
        %v437 = vpop.f32.mrb[0].mxu0
        %v438 = vadd.f32 %v246, %v437
        %v439 = vpop.f32.mrb[0].mxu0
        %440 = vdwg.mxu0
        %v441 = vmax.f32 %v379, 0.0
        %v442 = vmax.f32 %v382, 0.0
        %v443 = vmax.f32 %v387, 0.0
        %v444 = vmax.f32 %v390, 0.0
        %v445 = vmax.f32 %v395, 0.0
        %v446 = vmax.f32 %v398, 0.0
        %v447 = vmax.f32 %v403, 0.0
        %v448 = vmax.f32 %v406, 0.0
        %v449 = vmax.f32 %v411, 0.0
        %v450 = vmax.f32 %v414, 0.0
        %v451 = vmax.f32 %v419, 0.0
        %v452 = vmax.f32 %v422, 0.0
        %v453 = vmax.f32 %v427, 0.0
        %v454 = vmax.f32 %v430, 0.0
        %v455 = vmax.f32 %v435, 0.0
        %v456 = vmax.f32 %v438, 0.0
        %v457 = vpack.c.bf16 %v442, %v441
        %v458 = vpack.c.bf16 %v444, %v443
        %v459 = vpack.c.bf16 %v446, %v445
        %v460 = vpack.c.bf16 %v448, %v447
        %v461 = vpack.c.bf16 %v450, %v449
        %v462 = vpack.c.bf16 %v452, %v451
        %v463 = vpack.c.bf16 %v454, %v453
        %v464 = vpack.c.bf16 %v456, %v455
        %s465 = scalar_lea.vmem [#allocation5], 64
        %v466 = vld [vmem:[%s465] sm:$0xf]
        %v467 = vld [vmem:[%s465 + $0x4] sm:$0xf]
        %v468 = vld [vmem:[%s465 + $0x8] sm:$0xf]
        %v469 = vld [vmem:[%s465 + $0xc] sm:$0xf]
        %v470 = vld [vmem:[%s465 + $0x10] sm:$0xf]
        %v471 = vld [vmem:[%s465 + $0x14] sm:$0xf]
        %v472 = vld [vmem:[%s465 + $0x18] sm:$0xf]
        %v473 = vld [vmem:[%s465 + $0x1c] sm:$0xf]
        %v474 = vld [vmem:[%s465 + $0x20] sm:$0xf]
        %v475 = vld [vmem:[%s465 + $0x24] sm:$0xf]
        %v476 = vld [vmem:[%s465 + $0x28] sm:$0xf]
        %v477 = vld [vmem:[%s465 + $0x2c] sm:$0xf]
        %v478 = vld [vmem:[%s465 + $0x30] sm:$0xf]
        %v479 = vld [vmem:[%s465 + $0x34] sm:$0xf]
        %v480 = vld [vmem:[%s465 + $0x38] sm:$0xf]
        %v481 = vld [vmem:[%s465 + $0x3c] sm:$0xf]
        %v483 = vlaneseq
        %v484 = vshrl.u32 %v483, 7
        %v485 = vsub.s32 0, %v484
        %v486 = vrot.slane %v224, %v485
        %v504 = vunpack.c.l.b16 %v466
        %v505 = vunpack.c.l.b16 %v467
        %v506 = vunpack.c.l.b16 %v468
        %v507 = vunpack.c.l.b16 %v469
        %v508 = vunpack.c.l.b16 %v470
        %v509 = vunpack.c.l.b16 %v471
        %v510 = vunpack.c.l.b16 %v472
        %v511 = vunpack.c.l.b16 %v473
        %v512 = vunpack.c.l.b16 %v474
        %v513 = vunpack.c.l.b16 %v475
        %v514 = vunpack.c.l.b16 %v476
        %v515 = vunpack.c.l.b16 %v477
        %v516 = vunpack.c.l.b16 %v478
        %v517 = vunpack.c.l.b16 %v479
        %v518 = vunpack.c.l.b16 %v480
        %v519 = vunpack.c.l.b16 %v481
        %v520 = vpack.c.b16 %v505, %v504
        %v521 = vpack.c.b16 %v507, %v506
        %v522 = vpack.c.b16 %v509, %v508
        %v523 = vpack.c.b16 %v511, %v510
        %v524 = vpack.c.b16 %v513, %v512
        %v525 = vpack.c.b16 %v515, %v514
        %v526 = vpack.c.b16 %v517, %v516
        %v527 = vpack.c.b16 %v519, %v518
        %536 = vmatprep.subr.bf16.mxu0 0
        %537 = vmatpush1.bf16.msra.mxu0 %v520
        %538 = vmatprep.subr.bf16.mxu0 0
        %539 = vmatpush1.bf16.msra.mxu0 %v521
        %540 = vmatprep.subr.bf16.mxu0 0
        %541 = vmatpush1.bf16.msra.mxu0 %v522
        %542 = vmatprep.subr.bf16.mxu0 0
        %543 = vmatpush1.bf16.msra.mxu0 %v523
        %544 = vmatprep.subr.bf16.mxu0 0
        %545 = vmatpush1.bf16.msra.mxu0 %v524
        %546 = vmatprep.subr.bf16.mxu0 0
        %547 = vmatpush1.bf16.msra.mxu0 %v525
        %548 = vmatprep.subr.bf16.mxu0 0
        %549 = vmatpush1.bf16.msra.mxu0 %v526
        %550 = vmatprep.subr.bf16.mxu0 0
        %551 = vmatpush1.bf16.msra.mxu0 %v527
        %552 = vmatprep.subr.bf16.mxu0 0
        %553 = vmatpush1.bf16.msra.mxu0 0
        %554 = vmatprep.subr.bf16.mxu0 0
        %555 = vmatpush1.bf16.msra.mxu0 0
        %556 = vmatprep.subr.bf16.mxu0 0
        %557 = vmatpush1.bf16.msra.mxu0 0
        %558 = vmatprep.subr.bf16.mxu0 0
        %559 = vmatpush1.bf16.msra.mxu0 0
        %560 = vmatprep.subr.bf16.mxu0 0
        %561 = vmatpush1.bf16.msra.mxu0 0
        %562 = vmatprep.subr.bf16.mxu0 0
        %563 = vmatpush1.bf16.msra.mxu0 0
        %564 = vmatprep.subr.bf16.mxu0 0
        %565 = vmatpush1.bf16.msra.mxu0 0
        %566 = vmatprep.subr.bf16.mxu0 0
        %567 = vmatpush1.bf16.msra.mxu0 0
        %568 = vmatprep.mubr.bf16.mxu0 0
        %569 = vmatmul.mubr.bf16.gmra.mrb[0].mxu0 %v457
        %v570 = vpop.f32.mrb[0].mxu0
        %v571 = vadd.f32 %v486, %v570
        %v572 = vpop.f32.mrb[0].mxu0
        %v573 = vpop.f32.mrb[0].mxu0
        %v574 = vadd.f32 %v486, %v573
        %v575 = vpop.f32.mrb[0].mxu0
        %576 = vmatprep.mubr.bf16.mxu0 0
        %577 = vmatmul.mubr.bf16.gmra.mrb[0].mxu0 %v458
        %v578 = vpop.f32.mrb[0].mxu0
        %v579 = vadd.f32 %v486, %v578
        %v580 = vpop.f32.mrb[0].mxu0
        %v581 = vpop.f32.mrb[0].mxu0
        %v582 = vadd.f32 %v486, %v581
        %v583 = vpop.f32.mrb[0].mxu0
        %584 = vmatprep.mubr.bf16.mxu0 0
        %585 = vmatmul.mubr.bf16.gmra.mrb[0].mxu0 %v459
        %v586 = vpop.f32.mrb[0].mxu0
        %v587 = vadd.f32 %v486, %v586
        %v588 = vpop.f32.mrb[0].mxu0
        %v589 = vpop.f32.mrb[0].mxu0
        %v590 = vadd.f32 %v486, %v589
        %v591 = vpop.f32.mrb[0].mxu0
        %592 = vmatprep.mubr.bf16.mxu0 0
        %593 = vmatmul.mubr.bf16.gmra.mrb[0].mxu0 %v460
        %v594 = vpop.f32.mrb[0].mxu0
        %v595 = vadd.f32 %v486, %v594
        %v596 = vpop.f32.mrb[0].mxu0
        %v597 = vpop.f32.mrb[0].mxu0
        %v598 = vadd.f32 %v486, %v597
        %v599 = vpop.f32.mrb[0].mxu0
        %600 = vmatprep.mubr.bf16.mxu0 0
        %601 = vmatmul.mubr.bf16.gmra.mrb[0].mxu0 %v461
        %v602 = vpop.f32.mrb[0].mxu0
        %v603 = vadd.f32 %v486, %v602
        %v604 = vpop.f32.mrb[0].mxu0
        %v605 = vpop.f32.mrb[0].mxu0
        %v606 = vadd.f32 %v486, %v605
        %v607 = vpop.f32.mrb[0].mxu0
        %608 = vmatprep.mubr.bf16.mxu0 0
        %609 = vmatmul.mubr.bf16.gmra.mrb[0].mxu0 %v462
        %v610 = vpop.f32.mrb[0].mxu0
        %v611 = vadd.f32 %v486, %v610
        %v612 = vpop.f32.mrb[0].mxu0
        %v613 = vpop.f32.mrb[0].mxu0
        %v614 = vadd.f32 %v486, %v613
        %v615 = vpop.f32.mrb[0].mxu0
        %616 = vmatprep.mubr.bf16.mxu0 0
        %617 = vmatmul.mubr.bf16.gmra.mrb[0].mxu0 %v463
        %v618 = vpop.f32.mrb[0].mxu0
        %v619 = vadd.f32 %v486, %v618
        %v620 = vpop.f32.mrb[0].mxu0
        %v621 = vpop.f32.mrb[0].mxu0
        %v622 = vadd.f32 %v486, %v621
        %v623 = vpop.f32.mrb[0].mxu0
        %624 = vmatprep.mubr.bf16.mxu0 0
        %625 = vmatmul.mubr.bf16.gmra.mrb[0].mxu0 %v464
        %v626 = vpop.f32.mrb[0].mxu0
        %v627 = vadd.f32 %v486, %v626
        %v628 = vpop.f32.mrb[0].mxu0
        %v629 = vpop.f32.mrb[0].mxu0
        %v630 = vadd.f32 %v486, %v629
        %v631 = vpop.f32.mrb[0].mxu0
        %632 = vdwg.mxu0
        %v633 = vmax.f32 %v571, 0.0
        %v634 = vmax.f32 %v574, 0.0
        %v635 = vmax.f32 %v579, 0.0
        %v636 = vmax.f32 %v582, 0.0
        %v637 = vmax.f32 %v587, 0.0
        %v638 = vmax.f32 %v590, 0.0
        %v639 = vmax.f32 %v595, 0.0
        %v640 = vmax.f32 %v598, 0.0
        %v641 = vmax.f32 %v603, 0.0
        %v642 = vmax.f32 %v606, 0.0
        %v643 = vmax.f32 %v611, 0.0
        %v644 = vmax.f32 %v614, 0.0
        %v645 = vmax.f32 %v619, 0.0
        %v646 = vmax.f32 %v622, 0.0
        %v647 = vmax.f32 %v627, 0.0
        %v648 = vmax.f32 %v630, 0.0
        %v649 = vpack.c.bf16 %v634, %v633
        %v650 = vpack.c.bf16 %v636, %v635
        %v651 = vpack.c.bf16 %v638, %v637
        %v652 = vpack.c.bf16 %v640, %v639
        %v653 = vpack.c.bf16 %v642, %v641
        %v654 = vpack.c.bf16 %v644, %v643
        %v655 = vpack.c.bf16 %v646, %v645
        %v656 = vpack.c.bf16 %v648, %v647
        %s657 = scalar_lea.vmem [#allocation5], 128
        %v658 = vld [vmem:[%s657] sm:$0xf]
        %v659 = vld [vmem:[%s657 + $0x4] sm:$0xf]
        %v660 = vld [vmem:[%s657 + $0x8] sm:$0xf]
        %v661 = vld [vmem:[%s657 + $0xc] sm:$0xf]
        %v662 = vld [vmem:[%s657 + $0x10] sm:$0xf]
        %v663 = vld [vmem:[%s657 + $0x14] sm:$0xf]
        %v664 = vld [vmem:[%s657 + $0x18] sm:$0xf]
        %v665 = vld [vmem:[%s657 + $0x1c] sm:$0xf]
        %v666 = vld [vmem:[%s657 + $0x20] sm:$0xf]
        %v667 = vld [vmem:[%s657 + $0x24] sm:$0xf]
        %v668 = vld [vmem:[%s657 + $0x28] sm:$0xf]
        %v669 = vld [vmem:[%s657 + $0x2c] sm:$0xf]
        %v670 = vld [vmem:[%s657 + $0x30] sm:$0xf]
        %v671 = vld [vmem:[%s657 + $0x34] sm:$0xf]
        %v672 = vld [vmem:[%s657 + $0x38] sm:$0xf]
        %v673 = vld [vmem:[%s657 + $0x3c] sm:$0xf]
        %v675 = vlaneseq
        %v676 = vshrl.u32 %v675, 7
        %v677 = vsub.s32 0, %v676
        %v678 = vrot.slane %v225, %v677
        %v696 = vunpack.c.l.b16 %v658
        %v697 = vunpack.c.l.b16 %v659
        %v698 = vunpack.c.l.b16 %v660
        %v699 = vunpack.c.l.b16 %v661
        %v700 = vunpack.c.l.b16 %v662
        %v701 = vunpack.c.l.b16 %v663
        %v702 = vunpack.c.l.b16 %v664
        %v703 = vunpack.c.l.b16 %v665
        %v704 = vunpack.c.l.b16 %v666
        %v705 = vunpack.c.l.b16 %v667
        %v706 = vunpack.c.l.b16 %v668
        %v707 = vunpack.c.l.b16 %v669
        %v708 = vunpack.c.l.b16 %v670
        %v709 = vunpack.c.l.b16 %v671
        %v710 = vunpack.c.l.b16 %v672
        %v711 = vunpack.c.l.b16 %v673
        %v712 = vpack.c.b16 %v697, %v696
        %v713 = vpack.c.b16 %v699, %v698
        %v714 = vpack.c.b16 %v701, %v700
        %v715 = vpack.c.b16 %v703, %v702
        %v716 = vpack.c.b16 %v705, %v704
        %v717 = vpack.c.b16 %v707, %v706
        %v718 = vpack.c.b16 %v709, %v708
        %v719 = vpack.c.b16 %v711, %v710
        %728 = vmatprep.subr.bf16.mxu0 0
        %729 = vmatpush1.bf16.msra.mxu0 %v712
        %730 = vmatprep.subr.bf16.mxu0 0
        %731 = vmatpush1.bf16.msra.mxu0 %v713
        %732 = vmatprep.subr.bf16.mxu0 0
        %733 = vmatpush1.bf16.msra.mxu0 %v714
        %734 = vmatprep.subr.bf16.mxu0 0
        %735 = vmatpush1.bf16.msra.mxu0 %v715
        %736 = vmatprep.subr.bf16.mxu0 0
        %737 = vmatpush1.bf16.msra.mxu0 %v716
        %738 = vmatprep.subr.bf16.mxu0 0
        %739 = vmatpush1.bf16.msra.mxu0 %v717
        %740 = vmatprep.subr.bf16.mxu0 0
        %741 = vmatpush1.bf16.msra.mxu0 %v718
        %742 = vmatprep.subr.bf16.mxu0 0
        %743 = vmatpush1.bf16.msra.mxu0 %v719
        %744 = vmatprep.subr.bf16.mxu0 0
        %745 = vmatpush1.bf16.msra.mxu0 0
        %746 = vmatprep.subr.bf16.mxu0 0
        %747 = vmatpush1.bf16.msra.mxu0 0
        %748 = vmatprep.subr.bf16.mxu0 0
        %749 = vmatpush1.bf16.msra.mxu0 0
        %750 = vmatprep.subr.bf16.mxu0 0
        %751 = vmatpush1.bf16.msra.mxu0 0
        %752 = vmatprep.subr.bf16.mxu0 0
        %753 = vmatpush1.bf16.msra.mxu0 0
        %754 = vmatprep.subr.bf16.mxu0 0
        %755 = vmatpush1.bf16.msra.mxu0 0
        %756 = vmatprep.subr.bf16.mxu0 0
        %757 = vmatpush1.bf16.msra.mxu0 0
        %758 = vmatprep.subr.bf16.mxu0 0
        %759 = vmatpush1.bf16.msra.mxu0 0
        %760 = vmatprep.mubr.bf16.mxu0 0
        %761 = vmatmul.mubr.bf16.gmra.mrb[0].mxu0 %v649
        %v762 = vpop.f32.mrb[0].mxu0
        %v763 = vadd.f32 %v678, %v762
        %v764 = vpop.f32.mrb[0].mxu0
        %v765 = vpop.f32.mrb[0].mxu0
        %v766 = vadd.f32 %v678, %v765
        %v767 = vpop.f32.mrb[0].mxu0
        %768 = vmatprep.mubr.bf16.mxu0 0
        %769 = vmatmul.mubr.bf16.gmra.mrb[0].mxu0 %v650
        %v770 = vpop.f32.mrb[0].mxu0
        %v771 = vadd.f32 %v678, %v770
        %v772 = vpop.f32.mrb[0].mxu0
        %v773 = vpop.f32.mrb[0].mxu0
        %v774 = vadd.f32 %v678, %v773
        %v775 = vpop.f32.mrb[0].mxu0
        %776 = vmatprep.mubr.bf16.mxu0 0
        %777 = vmatmul.mubr.bf16.gmra.mrb[0].mxu0 %v651
        %v778 = vpop.f32.mrb[0].mxu0
        %v779 = vadd.f32 %v678, %v778
        %v780 = vpop.f32.mrb[0].mxu0
        %v781 = vpop.f32.mrb[0].mxu0
        %v782 = vadd.f32 %v678, %v781
        %v783 = vpop.f32.mrb[0].mxu0
        %784 = vmatprep.mubr.bf16.mxu0 0
        %785 = vmatmul.mubr.bf16.gmra.mrb[0].mxu0 %v652
        %v786 = vpop.f32.mrb[0].mxu0
        %v787 = vadd.f32 %v678, %v786
        %v788 = vpop.f32.mrb[0].mxu0
        %v789 = vpop.f32.mrb[0].mxu0
        %v790 = vadd.f32 %v678, %v789
        %v791 = vpop.f32.mrb[0].mxu0
        %792 = vmatprep.mubr.bf16.mxu0 0
        %793 = vmatmul.mubr.bf16.gmra.mrb[0].mxu0 %v653
        %v794 = vpop.f32.mrb[0].mxu0
        %v795 = vadd.f32 %v678, %v794
        %v796 = vpop.f32.mrb[0].mxu0
        %v797 = vpop.f32.mrb[0].mxu0
        %v798 = vadd.f32 %v678, %v797
        %v799 = vpop.f32.mrb[0].mxu0
        %800 = vmatprep.mubr.bf16.mxu0 0
        %801 = vmatmul.mubr.bf16.gmra.mrb[0].mxu0 %v654
        %v802 = vpop.f32.mrb[0].mxu0
        %v803 = vadd.f32 %v678, %v802
        %v804 = vpop.f32.mrb[0].mxu0
        %v805 = vpop.f32.mrb[0].mxu0
        %v806 = vadd.f32 %v678, %v805
        %v807 = vpop.f32.mrb[0].mxu0
        %808 = vmatprep.mubr.bf16.mxu0 0
        %809 = vmatmul.mubr.bf16.gmra.mrb[0].mxu0 %v655
        %v810 = vpop.f32.mrb[0].mxu0
        %v811 = vadd.f32 %v678, %v810
        %v812 = vpop.f32.mrb[0].mxu0
        %v813 = vpop.f32.mrb[0].mxu0
        %v814 = vadd.f32 %v678, %v813
        %v815 = vpop.f32.mrb[0].mxu0
        %816 = vmatprep.mubr.bf16.mxu0 0
        %817 = vmatmul.mubr.bf16.gmra.mrb[0].mxu0 %v656
        %v818 = vpop.f32.mrb[0].mxu0
        %v819 = vadd.f32 %v678, %v818
        %v820 = vpop.f32.mrb[0].mxu0
        %v821 = vpop.f32.mrb[0].mxu0
        %v822 = vadd.f32 %v678, %v821
        %v823 = vpop.f32.mrb[0].mxu0
        %824 = vdwg.mxu0
        %v825 = vmax.f32 %v763, 0.0
        %v826 = vmax.f32 %v766, 0.0
        %v827 = vmax.f32 %v771, 0.0
        %v828 = vmax.f32 %v774, 0.0
        %v829 = vmax.f32 %v779, 0.0
        %v830 = vmax.f32 %v782, 0.0
        %v831 = vmax.f32 %v787, 0.0
        %v832 = vmax.f32 %v790, 0.0
        %v833 = vmax.f32 %v795, 0.0
        %v834 = vmax.f32 %v798, 0.0
        %v835 = vmax.f32 %v803, 0.0
        %v836 = vmax.f32 %v806, 0.0
        %v837 = vmax.f32 %v811, 0.0
        %v838 = vmax.f32 %v814, 0.0
        %v839 = vmax.f32 %v819, 0.0
        %v840 = vmax.f32 %v822, 0.0
        %841 = vst [vmem:[%s203] sm:$0xff] %v825
        %842 = vst [vmem:[%s203 + $0x8] sm:$0xff] %v826
        %843 = vst [vmem:[%s203 + $0x10] sm:$0xff] %v827
        %844 = vst [vmem:[%s203 + $0x18] sm:$0xff] %v828
        %845 = vst [vmem:[%s203 + $0x20] sm:$0xff] %v829
        %846 = vst [vmem:[%s203 + $0x28] sm:$0xff] %v830
        %847 = vst [vmem:[%s203 + $0x30] sm:$0xff] %v831
        %848 = vst [vmem:[%s203 + $0x38] sm:$0xff] %v832
        %849 = vst [vmem:[%s203 + $0x40] sm:$0xff] %v833
        %850 = vst [vmem:[%s203 + $0x48] sm:$0xff] %v834
        %851 = vst [vmem:[%s203 + $0x50] sm:$0xff] %v835
        %852 = vst [vmem:[%s203 + $0x58] sm:$0xff] %v836
        %853 = vst [vmem:[%s203 + $0x60] sm:$0xff] %v837
        %854 = vst [vmem:[%s203 + $0x68] sm:$0xff] %v838
        %855 = vst [vmem:[%s203 + $0x70] sm:$0xff] %v839
        %856 = vst [vmem:[%s203 + $0x78] sm:$0xff] %v840
        %s857 = sand.u32 %s97, 1
        %s858 = scalar_lea.sflag [#allocation4], %s857
        %s859 = sand.u32 %s97, 1
        %s860 = smul.addr %s859, 128
        %s861 = scalar_lea.vmem [#allocation7], %s860
        // Predicated region
        $region41: #{mlp_forward.1} parent=31 // pred_check
          %p862 = pneg %p107
        $region42: #{mlp_forward.1} parent=31 // pred_check_branch
          %864 = sbr.rel (%p862) target = $region44
        $region43: #{mlp_forward.1} parent=31 // pred_region
          %s865 = smul.u32 16, %s21
          %s867 = ssub.s32 2048, 2048
          %868 = vsyncadd %s858, %s867
          %s869 = smul.addr %s865, 128
          %s870 = scalar_lea.hbm %s3, %s869
          %s871 = sshll.u32 %s861, 4
          %s872 = int_to_ptr.vmem [resolvable:$true] %s871
          %877 = dma.vmem_to_hbm [thread:$0]  %s872, 2048, %s870, %s858, 128, 128, 8
        $region44: #{mlp_forward.1} parent=31 // pred_fallthru
          _
      $region32: #{mlp_forward.1} parent=5 // pred_fallthru
        _
      %p878 = scmp.le.s32.totalorder 2, %s16
      // Predicated region
      $region45: #{mlp_forward.1} parent=5 // pred_check
        %p879 = pneg %p878
      $region46: #{mlp_forward.1} parent=5 // pred_check_branch
        %881 = sbr.rel (%p879) target = $region48
      $region47: #{mlp_forward.1} parent=5 // pred_region
        %s882 = ssub.s32 %s16, 2
        // Predicated region
        $region49: #{mlp_forward.1} parent=47 // pred_check
          %p883 = pneg %p113
        $region50: #{mlp_forward.1} parent=47 // pred_check_branch
          %885 = sbr.rel (%p883) target = $region52
        $region51: #{mlp_forward.1} parent=47 // pred_region
          %s886 = sand.u32 %s98, 1
          %s887 = scalar_lea.sflag [#allocation4], %s886
          %s888 = sand.u32 %s98, 1
          %s889 = smul.addr %s888, 128
          %s890 = scalar_lea.vmem [#allocation7], %s889
          %891 = dma.done %s887, 2048
        $region52: #{mlp_forward.1} parent=47 // pred_fallthru
          _
      $region48: #{mlp_forward.1} parent=5 // pred_fallthru
        _
    $region6: #{mlp_forward.1} parent=1 // loop_footer
      %s20 = sadd.s32 1, %s16
    $region7: #{mlp_forward.1} parent=1 // loop_footer_branch
      %15 = sbr.rel target = $region3
    $region8: #{mlp_forward.1} parent=1 // loop_exit
      _
    %892 = vsyncpa [#allocation3], 1
    %s893 = scalar_lea.sflag [#allocation3], 1
    %894 = vsyncpa %s893, 1
    %895 = vsyncpa [#allocation6], 1
    %896 = vsyncpa [#allocation4], 1
    %s897 = scalar_lea.sflag [#allocation4], 1
    %898 = vsyncpa %s897, 1

</llo_original>
